<compile_context>
chip_gen: v7x
topology: tpu7x:2x2x1
jax: 0.10.0
libtpu: 0.0.40
codegen_flags: <defaults>
</compile_context>

<pallas_src>
import math

import jax
import jax.numpy as jnp
from jax.experimental import pallas as pl
from jax.experimental.pallas import tpu as pltpu

BBOX_XFORM_CLIP = math.log(1000.0 / 16.0)


def _round_up(x, m):
    return ((x + m - 1) // m) * m


def _make_postproc_kernel(wx, wy, ww, wh, img_h, img_w):
    inv_wx, inv_wy, inv_ww, inv_wh = 1.0 / wx, 1.0 / wy, 1.0 / ww, 1.0 / wh
    x_max = float(img_w) - 1.0
    y_max = float(img_h) - 1.0

    def kernel(logits_ref, reg_ref, prop_ref, prob_ref, box_ref):
        # ---------------- softmax over classes ----------------
        logits = logits_ref[...].astype(jnp.float32)
        m = jnp.max(logits, axis=-1, keepdims=True)
        e = jnp.exp(logits - m)
        s = jnp.sum(e, axis=-1, keepdims=True)
        # EUP reciprocal + VPU multiply instead of a VALU divide.
        prob_ref[...] = (e * pl.reciprocal(s, approx=False)).astype(prob_ref.dtype)

        # ---------------- BoxCoder.decode + clip, in interleaved layout ----------------
        boxes = prop_ref[...].astype(jnp.float32)               # (TN, 4) xyxy
        widths = boxes[:, 2:3] - boxes[:, 0:1] + 1.0            # (TN, 1)  TO_REMOVE = 1
        heights = boxes[:, 3:4] - boxes[:, 1:2] + 1.0
        ctr_x = boxes[:, 0:1] + 0.5 * widths
        ctr_y = boxes[:, 1:2] + 0.5 * heights

        reg = reg_ref[...].astype(jnp.float32)                  # (TN, 4C) [dx,dy,dw,dh]*C
        tn, c4 = reg.shape

        col = jax.lax.broadcasted_iota(jnp.int32, (tn, c4), 1)  # column index
        k = col & 3                                             # coord within class group
        col_even = (col & 1) == 0                               # x-like vs y-like column
        k_lt_2 = k < 2                                          # ctr (dx/dy) vs size (dw/dh)

        # Per-column constants (weights, image bounds, signs).
        inv_col = jnp.where(k == 0, inv_wx,
                            jnp.where(k == 1, inv_wy,
                                      jnp.where(k == 2, inv_ww, inv_wh)))
        size_col = jnp.where(col_even, widths, heights)         # broadcast once each
        ctr_col = jnp.where(col_even, ctr_x, ctr_y)

        t = reg * inv_col
        # ctr_part is meaningful at dx/dy columns, wh_part at dw/dh columns.
        ctr_part = t * size_col + ctr_col
        wh_part = jnp.exp(jnp.minimum(t, BBOX_XFORM_CLIP)) * size_col

        # Output column 4j+k needs ctr_part from column 4j+(k&1) and wh_part from
        # column 4j+2+(k&1): a +/-2 lane shift.  Edge columns introduced by the
        # shift are never selected by the masks below.
        ctr_from_left2 = jnp.concatenate([ctr_part[:, :2], ctr_part[:, :-2]], axis=-1)
        wh_from_right2 = jnp.concatenate([wh_part[:, 2:], wh_part[:, -2:]], axis=-1)

        ctr_sel = jnp.where(k_lt_2, ctr_part, ctr_from_left2)   # pred_ctr_{x,y}
        wh_sel = jnp.where(k_lt_2, wh_from_right2, wh_part)     # pred_{w,h}
        half = jnp.where(k_lt_2, -0.5, 0.5)                     # x1/y1: -0.5w, x2/y2: +0.5w
        off = jnp.where(k_lt_2, 0.0, -1.0)                      # x2/y2 get the -1
        out = ctr_sel + half * wh_sel + off

        # _clip_boxes_to_image
        bound = jnp.where(col_even, x_max, y_max)
        box_ref[...] = jnp.clip(out, 0.0, bound).astype(box_ref.dtype)
        # NOTE: rows in a padded tail block compute on undefined data but those
        # rows are discarded; all math here is row-local so valid rows are safe.

    return kernel


def post_processor_forward(class_logits, box_regression, proposals, image_size,
                           weights=(10.0, 10.0, 5.0, 5.0), tile_n=None):
    """Single-image FPNPostProcessor hot path: softmax + box decode + clip.

    Returns (class_prob (N, C), clipped_boxes (N, 4C)) -- exactly the `prob`
    and `clipped_proposal` tensors fed to box_results_with_nms_and_limit.
    """
    N, C = class_logits.shape
    assert box_regression.shape == (N, 4 * C)
    assert proposals.shape == (N, 4)
    h, w = image_size  # (height, width)

    if tile_n is None:
        # Big tiles amortize per-step overhead; keep >= ~4 grid steps so the
        # "parallel" grid axis can be sharded across TensorCores on v7x.
        tile_n = min(512, _round_up(-(-N // 4), 8))
    tile_n = max(8, min(tile_n, _round_up(N, 8)))
    # VMEM budget: all double-buffered f32 blocks (logits + reg + prop + probs +
    # boxes = 10C + 8 floats per row) must fit the default scoped VMEM limit.
    bytes_per_row = (10 * C + 8) * 4 * 2
    tile_n = min(tile_n, max(8, (8 * 1024 * 1024 // bytes_per_row) // 8 * 8))

    kernel = _make_postproc_kernel(*weights, h, w)
    grid = (pl.cdiv(N, tile_n),)

    probs, boxes = pl.pallas_call(
        kernel,
        grid=grid,
        in_specs=[pl.BlockSpec((tile_n, C), lambda i: (i, 0)),       # class logits
                  pl.BlockSpec((tile_n, 4 * C), lambda i: (i, 0)),   # interleaved regression
                  pl.BlockSpec((tile_n, 4), lambda i: (i, 0))],      # proposals xyxy
        out_specs=[pl.BlockSpec((tile_n, C), lambda i: (i, 0)),
                   pl.BlockSpec((tile_n, 4 * C), lambda i: (i, 0))],
        out_shape=(jax.ShapeDtypeStruct((N, C), jnp.float32),
                   jax.ShapeDtypeStruct((N, 4 * C), jnp.float32)),
        compiler_params=pltpu.CompilerParams(dimension_semantics=("parallel",)),
    )(class_logits, box_regression, proposals)

    # No wrapper-side layout passes: `boxes` is already (N, 4C) interleaved
    # [x1, y1, x2, y2] per class, matching the reference format.
    return probs, boxes


def _reference(class_logits, box_regression, proposals, image_size,
               weights=(10.0, 10.0, 5.0, 5.0)):
    h, w = image_size
    wx, wy, ww, wh_ = weights
    probs = jax.nn.softmax(class_logits.astype(jnp.float32), axis=-1)

    widths = proposals[:, 2] - proposals[:, 0] + 1.0
    heights = proposals[:, 3] - proposals[:, 1] + 1.0
    ctr_x = proposals[:, 0] + 0.5 * widths
    ctr_y = proposals[:, 1] + 0.5 * heights

    dx = box_regression[:, 0::4] / wx
    dy = box_regression[:, 1::4] / wy
    dw = jnp.minimum(box_regression[:, 2::4] / ww, BBOX_XFORM_CLIP)
    dh = jnp.minimum(box_regression[:, 3::4] / wh_, BBOX_XFORM_CLIP)

    pred_ctr_x = dx * widths[:, None] + ctr_x[:, None]
    pred_ctr_y = dy * heights[:, None] + ctr_y[:, None]
    pred_w = jnp.exp(dw) * widths[:, None]
    pred_h = jnp.exp(dh) * heights[:, None]

    x1 = jnp.clip(pred_ctr_x - 0.5 * pred_w, 0.0, w - 1.0)
    y1 = jnp.clip(pred_ctr_y - 0.5 * pred_h, 0.0, h - 1.0)
    x2 = jnp.clip(pred_ctr_x + 0.5 * pred_w - 1.0, 0.0, w - 1.0)
    y2 = jnp.clip(pred_ctr_y + 0.5 * pred_h - 1.0, 0.0, h - 1.0)

    boxes = jnp.stack([x1, y1, x2, y2], axis=-1).reshape(proposals.shape[0], -1)
    return probs, boxes


if __name__ == "__main__":
    key = jax.random.PRNGKey(0)
    N, C = 16, 8          # proposals, classes (incl. background)
    H, W = 24, 32         # image height, width

    k1, k2, k3, k4 = jax.random.split(key, 4)
    class_logits = jax.random.normal(k1, (N, C), jnp.float32)
    box_regression = 0.5 * jax.random.normal(k2, (N, 4 * C), jnp.float32)

    # valid xyxy proposals inside the image
    xy1 = jax.random.uniform(k3, (N, 2), jnp.float32,
                             minval=0.0, maxval=jnp.array([W / 2.0, H / 2.0]))
    wh = jax.random.uniform(k4, (N, 2), jnp.float32,
                            minval=4.0, maxval=jnp.array([W / 2.0, H / 2.0]))
    proposals = jnp.concatenate([xy1, xy1 + wh], axis=-1).astype(jnp.float32)

    probs, boxes = post_processor_forward(class_logits, box_regression,
                                          proposals, (H, W))
    jax.block_until_ready((probs, boxes))

    ref_probs, ref_boxes = _reference(class_logits, box_regression,
                                      proposals, (H, W))
    assert jnp.allclose(probs, ref_probs, atol=1e-5, rtol=1e-5)
    assert jnp.allclose(boxes, ref_boxes, atol=1e-4, rtol=1e-4)

    print("KERNEL_OK")
</pallas_src>

<mosaic_0001>
module attributes {stable_mosaic.version = 11 : i64} {
  func.func @kernel(%arg0: i32, %arg1: memref<8x8xf32, #tpu.memory_space<vmem>>, %arg2: memref<8x32xf32, #tpu.memory_space<vmem>>, %arg3: memref<8x4xf32, #tpu.memory_space<vmem>>, %arg4: memref<8x8xf32, #tpu.memory_space<vmem>>, %arg5: memref<8x32xf32, #tpu.memory_space<vmem>>) attributes {dimension_semantics = [#tpu.dimension_semantics<parallel>], iteration_bounds = array<i64: 2>, scalar_prefetch = 0 : i64, scratch_operands = 0 : i64, tpu.core_type = #tpu.core_type<tc>, window_params = [{transform_indices = @transform_0, window_bounds = array<i64: 8, 8>}, {transform_indices = @transform_1, window_bounds = array<i64: 8, 32>}, {transform_indices = @transform_2, window_bounds = array<i64: 8, 4>}, {transform_indices = @transform_3, window_bounds = array<i64: 8, 8>}, {transform_indices = @transform_4, window_bounds = array<i64: 8, 32>}]} {
    %c0 = arith.constant 0 : index
    %c0_0 = arith.constant 0 : index
    %0 = vector.load %arg1[%c0, %c0_0] : memref<8x8xf32, #tpu.memory_space<vmem>>, vector<8x8xf32>
    %cst = arith.constant dense<0xFF800000> : vector<8xf32>
    %1 = vector.multi_reduction <maximumf>, %0, %cst [1] : vector<8x8xf32> to vector<8xf32>
    %2 = vector.shape_cast %1 : vector<8xf32> to vector<8x1xf32>
    %3 = vector.broadcast %2 : vector<8x1xf32> to vector<8x8xf32>
    %4 = arith.subf %0, %3 : vector<8x8xf32>
    %5 = math.exp %4 : vector<8x8xf32>
    %cst_1 = arith.constant dense<0.000000e+00> : vector<8xf32>
    %6 = vector.multi_reduction <add>, %5, %cst_1 [1] : vector<8x8xf32> to vector<8xf32>
    %7 = vector.shape_cast %6 : vector<8xf32> to vector<8x1xf32>
    %8 = tpu.reciprocal %7 : vector<8x1xf32> -> vector<8x1xf32>
    %9 = vector.broadcast %8 : vector<8x1xf32> to vector<8x8xf32>
    %10 = arith.mulf %5, %9 : vector<8x8xf32>
    %c0_2 = arith.constant 0 : index
    %c0_3 = arith.constant 0 : index
    %11 = vector.load %arg4[%c0_2, %c0_3] : memref<8x8xf32, #tpu.memory_space<vmem>>, vector<8x8xf32>
    tpu.vector_store %arg4[%c0_2, %c0_3], %10 {strides = array<i32>} : memref<8x8xf32, #tpu.memory_space<vmem>>, vector<8x8xf32>,
    %c0_4 = arith.constant 0 : index
    %c0_5 = arith.constant 0 : index
    %12 = vector.load %arg3[%c0_4, %c0_5] : memref<8x4xf32, #tpu.memory_space<vmem>>, vector<8x4xf32>
    %13 = vector.extract_strided_slice %12 {offsets = [0, 2], sizes = [8, 1], strides = [1, 1]} : vector<8x4xf32> to vector<8x1xf32>
    %14 = vector.extract_strided_slice %12 {offsets = [0, 0], sizes = [8, 1], strides = [1, 1]} : vector<8x4xf32> to vector<8x1xf32>
    %15 = arith.subf %13, %14 : vector<8x1xf32>
    %cst_6 = arith.constant 1.000000e+00 : f32
    %16 = vector.broadcast %cst_6 : f32 to vector<8x1xf32>
    %17 = arith.addf %15, %16 : vector<8x1xf32>
    %18 = vector.extract_strided_slice %12 {offsets = [0, 3], sizes = [8, 1], strides = [1, 1]} : vector<8x4xf32> to vector<8x1xf32>
    %19 = vector.extract_strided_slice %12 {offsets = [0, 1], sizes = [8, 1], strides = [1, 1]} : vector<8x4xf32> to vector<8x1xf32>
    %20 = arith.subf %18, %19 : vector<8x1xf32>
    %cst_7 = arith.constant 1.000000e+00 : f32
    %21 = vector.broadcast %cst_7 : f32 to vector<8x1xf32>
    %22 = arith.addf %20, %21 : vector<8x1xf32>
    %23 = vector.extract_strided_slice %12 {offsets = [0, 0], sizes = [8, 1], strides = [1, 1]} : vector<8x4xf32> to vector<8x1xf32>
    %cst_8 = arith.constant 5.000000e-01 : f32
    %24 = vector.broadcast %cst_8 : f32 to vector<8x1xf32>
    %25 = arith.mulf %24, %17 : vector<8x1xf32>
    %26 = arith.addf %23, %25 : vector<8x1xf32>
    %27 = vector.extract_strided_slice %12 {offsets = [0, 1], sizes = [8, 1], strides = [1, 1]} : vector<8x4xf32> to vector<8x1xf32>
    %cst_9 = arith.constant 5.000000e-01 : f32
    %28 = vector.broadcast %cst_9 : f32 to vector<8x1xf32>
    %29 = arith.mulf %28, %22 : vector<8x1xf32>
    %30 = arith.addf %27, %29 : vector<8x1xf32>
    %c0_10 = arith.constant 0 : index
    %c0_11 = arith.constant 0 : index
    %31 = vector.load %arg2[%c0_10, %c0_11] : memref<8x32xf32, #tpu.memory_space<vmem>>, vector<8x32xf32>
    %32 = tpu.iota {dimensions = array<i32: 1>} : vector<8x32xi32>
    %c3_i32 = arith.constant 3 : i32
    %33 = vector.broadcast %c3_i32 : i32 to vector<8x32xi32>
    %34 = arith.andi %32, %33 : vector<8x32xi32>
    %c1_i32 = arith.constant 1 : i32
    %35 = vector.broadcast %c1_i32 : i32 to vector<8x32xi32>
    %36 = arith.andi %32, %35 : vector<8x32xi32>
    %c0_i32 = arith.constant 0 : i32
    %37 = vector.broadcast %c0_i32 : i32 to vector<8x32xi32>
    %38 = arith.cmpi eq, %36, %37 : vector<8x32xi32>
    %c2_i32 = arith.constant 2 : i32
    %39 = vector.broadcast %c2_i32 : i32 to vector<8x32xi32>
    %40 = arith.cmpi slt, %34, %39 : vector<8x32xi32>
    %c0_i32_12 = arith.constant 0 : i32
    %41 = vector.broadcast %c0_i32_12 : i32 to vector<8x32xi32>
    %42 = arith.cmpi eq, %34, %41 : vector<8x32xi32>
    %c1_i32_13 = arith.constant 1 : i32
    %43 = vector.broadcast %c1_i32_13 : i32 to vector<8x32xi32>
    %44 = arith.cmpi eq, %34, %43 : vector<8x32xi32>
    %c2_i32_14 = arith.constant 2 : i32
    %45 = vector.broadcast %c2_i32_14 : i32 to vector<8x32xi32>
    %46 = arith.cmpi eq, %34, %45 : vector<8x32xi32>
    %cst_15 = arith.constant 2.000000e-01 : f32
    %cst_16 = arith.constant 2.000000e-01 : f32
    %47 = vector.broadcast %cst_15 : f32 to vector<8x32xf32>
    %48 = vector.broadcast %cst_16 : f32 to vector<8x32xf32>
    %49 = arith.select %46, %47, %48 : vector<8x32xi1>, vector<8x32xf32>
    %cst_17 = arith.constant 1.000000e-01 : f32
    %50 = vector.broadcast %cst_17 : f32 to vector<8x32xf32>
    %51 = arith.select %44, %50, %49 : vector<8x32xi1>, vector<8x32xf32>
    %cst_18 = arith.constant 1.000000e-01 : f32
    %52 = vector.broadcast %cst_18 : f32 to vector<8x32xf32>
    %53 = arith.select %42, %52, %51 : vector<8x32xi1>, vector<8x32xf32>
    %54 = vector.shape_cast %17 : vector<8x1xf32> to vector<8x1xf32>
    %55 = vector.broadcast %54 : vector<8x1xf32> to vector<8x32xf32>
    %56 = vector.shape_cast %22 : vector<8x1xf32> to vector<8x1xf32>
    %57 = vector.broadcast %56 : vector<8x1xf32> to vector<8x32xf32>
    %58 = arith.select %38, %55, %57 : vector<8x32xi1>, vector<8x32xf32>
    %59 = vector.shape_cast %26 : vector<8x1xf32> to vector<8x1xf32>
    %60 = vector.broadcast %59 : vector<8x1xf32> to vector<8x32xf32>
    %61 = vector.shape_cast %30 : vector<8x1xf32> to vector<8x1xf32>
    %62 = vector.broadcast %61 : vector<8x1xf32> to vector<8x32xf32>
    %63 = arith.select %38, %60, %62 : vector<8x32xi1>, vector<8x32xf32>
    %64 = arith.mulf %31, %53 : vector<8x32xf32>
    %65 = arith.mulf %64, %58 : vector<8x32xf32>
    %66 = arith.addf %65, %63 : vector<8x32xf32>
    %cst_19 = arith.constant 4.13516665 : f32
    %67 = vector.broadcast %cst_19 : f32 to vector<8x32xf32>
    %68 = arith.minimumf %64, %67 : vector<8x32xf32>
    %69 = math.exp %68 : vector<8x32xf32>
    %70 = arith.mulf %69, %58 : vector<8x32xf32>
    %71 = vector.extract_strided_slice %66 {offsets = [0, 0], sizes = [8, 2], strides = [1, 1]} : vector<8x32xf32> to vector<8x2xf32>
    %72 = vector.extract_strided_slice %66 {offsets = [0, 0], sizes = [8, 30], strides = [1, 1]} : vector<8x32xf32> to vector<8x30xf32>
    %73 = tpu.concatenate %71, %72 in 1 : vector<8x2xf32>, vector<8x30xf32> -> vector<8x32xf32>
    %74 = vector.extract_strided_slice %70 {offsets = [0, 2], sizes = [8, 30], strides = [1, 1]} : vector<8x32xf32> to vector<8x30xf32>
    %75 = vector.extract_strided_slice %70 {offsets = [0, 30], sizes = [8, 2], strides = [1, 1]} : vector<8x32xf32> to vector<8x2xf32>
    %76 = tpu.concatenate %74, %75 in 1 : vector<8x30xf32>, vector<8x2xf32> -> vector<8x32xf32>
    %77 = arith.select %40, %66, %73 : vector<8x32xi1>, vector<8x32xf32>
    %78 = arith.select %40, %76, %70 : vector<8x32xi1>, vector<8x32xf32>
    %cst_20 = arith.constant -5.000000e-01 : f32
    %cst_21 = arith.constant 5.000000e-01 : f32
    %79 = vector.broadcast %cst_20 : f32 to vector<8x32xf32>
    %80 = vector.broadcast %cst_21 : f32 to vector<8x32xf32>
    %81 = arith.select %40, %79, %80 : vector<8x32xi1>, vector<8x32xf32>
    %cst_22 = arith.constant 0.000000e+00 : f32
    %cst_23 = arith.constant -1.000000e+00 : f32
    %82 = vector.broadcast %cst_22 : f32 to vector<8x32xf32>
    %83 = vector.broadcast %cst_23 : f32 to vector<8x32xf32>
    %84 = arith.select %40, %82, %83 : vector<8x32xi1>, vector<8x32xf32>
    %85 = arith.mulf %81, %78 : vector<8x32xf32>
    %86 = arith.addf %77, %85 : vector<8x32xf32>
    %87 = arith.addf %86, %84 : vector<8x32xf32>
    %cst_24 = arith.constant 3.100000e+01 : f32
    %cst_25 = arith.constant 2.300000e+01 : f32
    %88 = vector.broadcast %cst_24 : f32 to vector<8x32xf32>
    %89 = vector.broadcast %cst_25 : f32 to vector<8x32xf32>
    %90 = arith.select %38, %88, %89 : vector<8x32xi1>, vector<8x32xf32>
    %cst_26 = arith.constant 0.000000e+00 : f32
    %91 = vector.broadcast %cst_26 : f32 to vector<8x32xf32>
    %92 = arith.maximumf %91, %87 : vector<8x32xf32>
    %93 = arith.minimumf %90, %92 : vector<8x32xf32>
    %c0_27 = arith.constant 0 : index
    %c0_28 = arith.constant 0 : index
    %94 = vector.load %arg5[%c0_27, %c0_28] : memref<8x32xf32, #tpu.memory_space<vmem>>, vector<8x32xf32>
    tpu.vector_store %arg5[%c0_27, %c0_28], %93 {strides = array<i32>} : memref<8x32xf32, #tpu.memory_space<vmem>>, vector<8x32xf32>,
    return
  }
  func.func @transform_0(%arg0: i32) -> (i32, i32) {
    %c0_i32 = arith.constant 0 : i32
    %c0_i32_0 = arith.constant 0 : i32
    return %arg0, %c0_i32 : i32, i32
  }
  func.func @transform_1(%arg0: i32) -> (i32, i32) {
    %c0_i32 = arith.constant 0 : i32
    %c0_i32_0 = arith.constant 0 : i32
    return %arg0, %c0_i32 : i32, i32
  }
  func.func @transform_2(%arg0: i32) -> (i32, i32) {
    %c0_i32 = arith.constant 0 : i32
    %c0_i32_0 = arith.constant 0 : i32
    return %arg0, %c0_i32 : i32, i32
  }
  func.func @transform_3(%arg0: i32) -> (i32, i32) {
    %c0_i32 = arith.constant 0 : i32
    %c0_i32_0 = arith.constant 0 : i32
    return %arg0, %c0_i32 : i32, i32
  }
  func.func @transform_4(%arg0: i32) -> (i32, i32) {
    %c0_i32 = arith.constant 0 : i32
    %c0_i32_0 = arith.constant 0 : i32
    return %arg0, %c0_i32 : i32, i32
  }
}

</mosaic_0001>

<llo_original>
// kernel: tpu_custom_call.1
$region0: #{tpu_custom_call.1}
  #allocation0 [shape = 'u32[]', space=smem, size = 0x4, offset = 0x4, fixed_abs, tag = 'smem constant byte address 0x4 - core index']
  #allocation1 [shape = 'u32[144,128]{1,0:T(1,128)}', space=vmem, size = 0x12000, scoped, tag = 'internal scratch']
  %s0 = inlined_call_operand.vmem [shape: f32[16,8], index: 0, kind: input, shape index: {}]
  %s1 = inlined_call_operand.vmem [shape: f32[16,32], index: 1, kind: input, shape index: {}]
  %s2 = inlined_call_operand.vmem [shape: f32[16,4], index: 2, kind: input, shape index: {}]
  %s3 = inlined_call_operand.vmem [shape: f32[16,8], index: 3, kind: output, shape index: {0}]
  %s4 = inlined_call_operand.hbm [shape: f32[16,32], index: 4, kind: output, shape index: {1}]
  %5 = xla_tuple %s3, %s4
  %s6 = sld [smem:[#allocation0]]
  $region53: #{tpu_custom_call.1} parent=0
    _
  %s8 = ssub.s32 1, %s6
  %s9 = scalar_select 0, %s8, %s6
  $region1: #{tpu_custom_call.1} parent=0
    #allocation2 [shape = 'u8[8192]{0}', space=vmem, size = 0x2000, scoped, tag = 'output window, operand 1']
    #allocation3 [shape = 's32[2]{0}', space=sflag, size = 0x8, scoped, tag = 'scoped memory for tpu_custom_call.1']
    %10 = vsyncpa [#allocation3], 0
    %s11 = scalar_lea.sflag [#allocation3], 1
    %12 = vsyncpa %s11, 0
    loop: start=0, step=1, limit=4
    $region2: #{tpu_custom_call.1} parent=1 // loop_pre_header
      _
    $region3: #{tpu_custom_call.1} parent=1 // loop_header
      %s14 = sphi 0, %s18
      %p15 = scmp.ge.s32.totalorder %s14, 4
      %s24 = sphi 0, %s26
      %s27 = sphi 0, %s24
      %s28 = sphi 0, %s27
      %s44 = sphi 0, %s28
      %s50 = sphi 0, %s52
      %s53 = sphi 0, %s50
      %s54 = sphi 0, %s53
      %s70 = sphi 0, %s54
      %s76 = sphi 0, %s78
      %s79 = sphi 0, %s76
      %s80 = sphi 0, %s79
      %s96 = sphi 0, %s80
      %s102 = sphi 0, %s104
      %s105 = sphi 0, %s102
      %s106 = sphi 0, %s105
      %s122 = sphi 0, %s106
      %s128 = sphi 0, %s130
      %s131 = sphi 0, %s128
      %s132 = sphi 0, %s131
      %s148 = sphi 0, %s132
    $region4: #{tpu_custom_call.1} parent=1 // loop_header_branch
      %17 = sbr.rel (%p15) target = $region8
    $region5: #{tpu_custom_call.1} parent=1 // loop_body
      %s19 = ssub.s32 %s14, 1
      %s20 = ssub.s32 %s14, 2
      %s21 = sadd.s32 %s14, 1
      %s22 = ssub.s32 %s14, %s21
      %p23 = scmp.eq.s32.totalorder %s22, 0
      %s25 = sadd.s32 %s24, 1
      %s26 = scalar_select %p23, %s24, %s25
      %p29 = pneg %p23
      %p30 = scmp.eq.s32.totalorder %s14, 1
      %p31 = por %p29, %p30
      %p32 = scmp.ne.s32.totalorder %s24, %s27
      %p33 = scmp.eq.s32.totalorder %s14, 0
      %p34 = por %p32, %p33
      %p35 = scmp.ne.s32.totalorder %s24, %s27
      %p36 = scmp.eq.s32.totalorder %s19, 1
      %p37 = por %p35, %p36
      %p38 = scmp.ne.s32.totalorder %s27, %s28
      %p39 = scmp.eq.s32.totalorder %s19, 0
      %p40 = por %p38, %p39
      %p41 = scmp.ne.s32.totalorder %s27, %s28
      %p42 = scmp.eq.s32.totalorder %s20, 1
      %p43 = por %p41, %p42
      %p45 = scmp.ne.s32.totalorder %s28, %s44
      %p46 = scmp.eq.s32.totalorder %s20, 0
      %p47 = por %p45, %p46
      %s48 = ssub.s32 %s14, %s21
      %p49 = scmp.eq.s32.totalorder %s48, 0
      %s51 = sadd.s32 %s50, 1
      %s52 = scalar_select %p49, %s50, %s51
      %p55 = pneg %p49
      %p56 = scmp.eq.s32.totalorder %s14, 1
      %p57 = por %p55, %p56
      %p58 = scmp.ne.s32.totalorder %s50, %s53
      %p59 = scmp.eq.s32.totalorder %s14, 0
      %p60 = por %p58, %p59
      %p61 = scmp.ne.s32.totalorder %s50, %s53
      %p62 = scmp.eq.s32.totalorder %s19, 1
      %p63 = por %p61, %p62
      %p64 = scmp.ne.s32.totalorder %s53, %s54
      %p65 = scmp.eq.s32.totalorder %s19, 0
      %p66 = por %p64, %p65
      %p67 = scmp.ne.s32.totalorder %s53, %s54
      %p68 = scmp.eq.s32.totalorder %s20, 1
      %p69 = por %p67, %p68
      %p71 = scmp.ne.s32.totalorder %s54, %s70
      %p72 = scmp.eq.s32.totalorder %s20, 0
      %p73 = por %p71, %p72
      %s74 = ssub.s32 %s14, %s21
      %p75 = scmp.eq.s32.totalorder %s74, 0
      %s77 = sadd.s32 %s76, 1
      %s78 = scalar_select %p75, %s76, %s77
      %p81 = pneg %p75
      %p82 = scmp.eq.s32.totalorder %s14, 1
      %p83 = por %p81, %p82
      %p84 = scmp.ne.s32.totalorder %s76, %s79
      %p85 = scmp.eq.s32.totalorder %s14, 0
      %p86 = por %p84, %p85
      %p87 = scmp.ne.s32.totalorder %s76, %s79
      %p88 = scmp.eq.s32.totalorder %s19, 1
      %p89 = por %p87, %p88
      %p90 = scmp.ne.s32.totalorder %s79, %s80
      %p91 = scmp.eq.s32.totalorder %s19, 0
      %p92 = por %p90, %p91
      %p93 = scmp.ne.s32.totalorder %s79, %s80
      %p94 = scmp.eq.s32.totalorder %s20, 1
      %p95 = por %p93, %p94
      %p97 = scmp.ne.s32.totalorder %s80, %s96
      %p98 = scmp.eq.s32.totalorder %s20, 0
      %p99 = por %p97, %p98
      %s100 = ssub.s32 %s14, %s21
      %p101 = scmp.eq.s32.totalorder %s100, 0
      %s103 = sadd.s32 %s102, 1
      %s104 = scalar_select %p101, %s102, %s103
      %p107 = pneg %p101
      %p108 = scmp.eq.s32.totalorder %s14, 1
      %p109 = por %p107, %p108
      %p110 = scmp.ne.s32.totalorder %s102, %s105
      %p111 = scmp.eq.s32.totalorder %s14, 0
      %p112 = por %p110, %p111
      %p113 = scmp.ne.s32.totalorder %s102, %s105
      %p114 = scmp.eq.s32.totalorder %s19, 1
      %p115 = por %p113, %p114
      %p116 = scmp.ne.s32.totalorder %s105, %s106
      %p117 = scmp.eq.s32.totalorder %s19, 0
      %p118 = por %p116, %p117
      %p119 = scmp.ne.s32.totalorder %s105, %s106
      %p120 = scmp.eq.s32.totalorder %s20, 1
      %p121 = por %p119, %p120
      %p123 = scmp.ne.s32.totalorder %s106, %s122
      %p124 = scmp.eq.s32.totalorder %s20, 0
      %p125 = por %p123, %p124
      %s126 = ssub.s32 %s14, %s21
      %p127 = scmp.eq.s32.totalorder %s126, 0
      %s129 = sadd.s32 %s128, 1
      %s130 = scalar_select %p127, %s128, %s129
      %p133 = pneg %p127
      %p134 = scmp.eq.s32.totalorder %s14, 1
      %p135 = por %p133, %p134
      %p136 = scmp.ne.s32.totalorder %s128, %s131
      %p137 = scmp.eq.s32.totalorder %s14, 0
      %p138 = por %p136, %p137
      %p139 = scmp.ne.s32.totalorder %s128, %s131
      %p140 = scmp.eq.s32.totalorder %s19, 1
      %p141 = por %p139, %p140
      %p142 = scmp.ne.s32.totalorder %s131, %s132
      %p143 = scmp.eq.s32.totalorder %s19, 0
      %p144 = por %p142, %p143
      %p145 = scmp.ne.s32.totalorder %s131, %s132
      %p146 = scmp.eq.s32.totalorder %s20, 1
      %p147 = por %p145, %p146
      %p149 = scmp.ne.s32.totalorder %s132, %s148
      %p150 = scmp.eq.s32.totalorder %s20, 0
      %p151 = por %p149, %p150
      %p152 = scmp.le.s32.totalorder 1, %s14
      %p153 = scmp.lt.s32.totalorder %s14, 3
      %p154 = pnand %p152, %p153
      %p155 = pneg %p154
      // Predicated region
      $region9: #{tpu_custom_call.1} parent=5 // pred_check
        _
      $region10: #{tpu_custom_call.1} parent=5 // pred_check_branch
        %157 = sbr.rel (%p154) target = $region12
      $region11: #{tpu_custom_call.1} parent=5 // pred_region
        %s158 = ssub.s32 %s14, 1
      $region12: #{tpu_custom_call.1} parent=5 // pred_fallthru
        _
      %p159 = scmp.lt.s32.totalorder %s14, 2
      // Predicated region
      $region13: #{tpu_custom_call.1} parent=5 // pred_check
        %p160 = pneg %p159
      $region14: #{tpu_custom_call.1} parent=5 // pred_check_branch
        %162 = sbr.rel (%p160) target = $region16
      $region15: #{tpu_custom_call.1} parent=5 // pred_region
        // Predicated region
        $region17: #{tpu_custom_call.1} parent=15 // pred_check
          %p163 = pneg %p34
        $region18: #{tpu_custom_call.1} parent=15 // pred_check_branch
          %165 = sbr.rel (%p163) target = $region20
        $region19: #{tpu_custom_call.1} parent=15 // pred_region
          %p166 = scmp.lt.s32.totalorder %s14, 1
          %s167 = scalar_select %p166, %s14, 1
          %s168 = smul.addr %s167, 8
          %s169 = scalar_lea.vmem %s0, %s168
        $region20: #{tpu_custom_call.1} parent=15 // pred_fallthru
          _
        // Predicated region
        $region21: #{tpu_custom_call.1} parent=15 // pred_check
          %p170 = pneg %p60
        $region22: #{tpu_custom_call.1} parent=15 // pred_check_branch
          %172 = sbr.rel (%p170) target = $region24
        $region23: #{tpu_custom_call.1} parent=15 // pred_region
          %p173 = scmp.lt.s32.totalorder %s14, 1
          %s174 = scalar_select %p173, %s14, 1
          %s175 = smul.addr %s174, 8
          %s176 = scalar_lea.vmem %s1, %s175
        $region24: #{tpu_custom_call.1} parent=15 // pred_fallthru
          _
        // Predicated region
        $region25: #{tpu_custom_call.1} parent=15 // pred_check
          %p177 = pneg %p86
        $region26: #{tpu_custom_call.1} parent=15 // pred_check_branch
          %179 = sbr.rel (%p177) target = $region28
        $region27: #{tpu_custom_call.1} parent=15 // pred_region
          %p180 = scmp.lt.s32.totalorder %s14, 1
          %s181 = scalar_select %p180, %s14, 1
          %s182 = smul.addr %s181, 8
          %s183 = scalar_lea.vmem %s2, %s182
        $region28: #{tpu_custom_call.1} parent=15 // pred_fallthru
          _
      $region16: #{tpu_custom_call.1} parent=5 // pred_fallthru
        _
      %p184 = scmp.le.s32.totalorder 1, %s14
      %p185 = scmp.lt.s32.totalorder %s14, 3
      %p186 = pnand %p184, %p185
      %p187 = pneg %p186
      // Predicated region
      $region29: #{tpu_custom_call.1} parent=5 // pred_check
        _
      $region30: #{tpu_custom_call.1} parent=5 // pred_check_branch
        %189 = sbr.rel (%p186) target = $region32
      $region31: #{tpu_custom_call.1} parent=5 // pred_region
        %s190 = ssub.s32 %s14, 1
        %p191 = scmp.lt.s32.totalorder %s19, 1
        %s192 = scalar_select %p191, %s19, 1
        %s193 = smul.addr %s192, 8
        %s194 = scalar_lea.vmem %s0, %s193
        %p195 = pneg %p40
        %p196 = pneg %p37
        %p197 = scmp.lt.s32.totalorder %s19, 1
        %s198 = scalar_select %p197, %s19, 1
        %s199 = smul.addr %s198, 8
        %s200 = scalar_lea.vmem %s1, %s199
        %p201 = pneg %p66
        %p202 = pneg %p63
        %p203 = scmp.lt.s32.totalorder %s19, 1
        %s204 = scalar_select %p203, %s19, 1
        %s205 = smul.addr %s204, 8
        %s206 = scalar_lea.vmem %s2, %s205
        %p207 = pneg %p92
        %p208 = pneg %p89
        %p209 = pneg %p118
        %p210 = pneg %p115
        %p211 = scmp.lt.s32.totalorder %s19, 1
        %s212 = scalar_select %p211, %s19, 1
        %s213 = smul.addr %s212, 8
        %s214 = scalar_lea.vmem %s3, %s213
        %p215 = pneg %p144
        %p216 = pneg %p141
        %s217 = sand.u32 %s131, 1
        %s218 = scalar_lea.sflag [#allocation3], %s217
        %s219 = sand.u32 %s131, 1
        %s220 = smul.addr %s219, 8
        %s221 = scalar_lea.vmem [#allocation2], %s220
        %p222 = scmp.lt.s32.totalorder %s19, 1
        %s223 = scalar_select %p222, %s19, 1
        %s224 = smul.addr %s223, 8
        %s225 = scalar_lea.vmem %s0, %s224
        %p226 = scmp.lt.s32.totalorder %s19, 1
        %s227 = scalar_select %p226, %s19, 1
        %s228 = smul.addr %s227, 8
        %s229 = scalar_lea.vmem %s1, %s228
        %p230 = scmp.lt.s32.totalorder %s19, 1
        %s231 = scalar_select %p230, %s19, 1
        %s232 = smul.addr %s231, 8
        %s233 = scalar_lea.vmem %s2, %s232
        %p234 = scmp.lt.s32.totalorder %s19, 1
        %s235 = scalar_select %p234, %s19, 1
        %s236 = smul.addr %s235, 8
        %s237 = scalar_lea.vmem %s3, %s236
        %v238 = vld [vmem:[%s225] sm:$0xff]
        %vm239 = vcmask 64512
        %v240 = vsel %vm239, %v238, -inf
        %241 = vmax.xlane.f32.xlu0 %v240
        %v242 = vpop.xlane.xlu0 %241
        %v243 = vsub.f32 %v238, %v242
        %v244 = vmul.f32 %v243, 1.442695
        %v245 = vpow.pop %v244
        %v246 = vsel %vm239, %v245, 0.0
        %247 = vadd.xlane.f32.xlu0 %v246
        %v248 = vpop.xlane.xlu0 %247
        %v249 = vrcp.pop %v248
        %v250 = vmul.f32 %v245, %v249
        %251 = vst.msk [vmem:[%s237] sm:$0xff] %vm239, %v250
        %v252 = vld [vmem:[%s233] sm:$0xff]
        %254 = vrot.lane.b32.xlu0 %v252, 2
        %v255 = vpop.permute.xlu0 %254
        %v257 = vsub.f32 %v252, %v255
        %v258 = vadd.f32 %v257, 1.0
        %v259 = vmul.f32 %v258, 0.5
        %261 = vrot.lane.b32.xlu0 %v259, 126
        %v262 = vpop.permute.xlu0 %261
        %v264 = vadd.f32 %v252, %v262
        %v265 = vld [vmem:[%s229] sm:$0xff]
        %v266 = vlaneseq
        %v267 = vand.u32 %v266, 127
        %v268 = vand.u32 %v267, 3
        %v269 = vand.u32 %v267, 1
        %vm270 = vcmp.eq.s32.totalorder %v269, 0
        %vm271 = vcmp.lt.s32.totalorder %v268, 2
        %vm272 = vcmp.eq.s32.totalorder %v268, 0
        %vm273 = vcmp.eq.s32.totalorder %v268, 1
        %v274 = vsel %vm273, 0.1, 0.2
        %v275 = vsel %vm272, 0.1, %v274
        %277 = vset.pattern.permute.xlu0 2
        %278 = vperm.xlu0 %277, %v258
        %v279 = vpop.permute.xlu0 %278
        %281 = vset.pattern.permute.xlu0 3
        %282 = vperm.xlu0 %281, %v258
        %v283 = vpop.permute.xlu0 %282
        %v285 = vsel %vm270, %v279, %v283
        %287 = vset.pattern.permute.xlu0 0
        %288 = vperm.xlu0 %287, %v264
        %v289 = vpop.permute.xlu0 %288
        %291 = vset.pattern.permute.xlu0 1
        %292 = vperm.xlu0 %291, %v264
        %v293 = vpop.permute.xlu0 %292
        %v295 = vsel %vm270, %v289, %v293
        %v296 = vmul.f32 %v265, %v275
        %v297 = vmul.f32 %v296, %v285
        %v298 = vadd.f32 %v297, %v295
        %v299 = vmin.f32 %v296, 4.1351666
        %v300 = vmul.f32 %v299, 1.442695
        %v301 = vpow.pop %v300
        %v302 = vmul.f32 %v301, %v285
        %304 = vrot.lane.b32.xlu0 %v298, 2
        %v305 = vpop.permute.xlu0 %304
        %vm307 = vcmask 15360
        %v308 = vsel %vm307, %v298, %v305
        %310 = vrot.lane.b32.xlu0 %v302, 126
        %v311 = vpop.permute.xlu0 %310
        %vm313 = vcmask 244736
        %v314 = vsel %vm313, %v311, %v302
        %v315 = vsel %vm271, %v298, %v308
        %v316 = vsel %vm271, %v314, %v302
        %v317 = vsel %vm271, -0.5, 0.5
        %v318 = vsel %vm271, 0.0, -1.0
        %v319 = vmul.f32 %v317, %v316
        %v320 = vadd.f32 %v315, %v319
        %v321 = vadd.f32 %v320, %v318
        %v322 = vsel %vm270, 31.0, 23.0
        %v323 = vmax.f32 %v321, 0.0
        %v324 = vmin.f32 %v322, %v323
        %vm325 = vcmask 261120
        %326 = vst.msk [vmem:[%s221] sm:$0xff] %vm325, %v324
        %p327 = scmp.lt.s32.totalorder %s19, 1
        %s328 = scalar_select %p327, %s19, 1
        %s329 = smul.addr %s328, 8
        %s330 = scalar_lea.vmem %s3, %s329
        %s331 = sand.u32 %s131, 1
        %s332 = scalar_lea.sflag [#allocation3], %s331
        %s333 = sand.u32 %s131, 1
        %s334 = smul.addr %s333, 8
        %s335 = scalar_lea.vmem [#allocation2], %s334
        // Predicated region
        $region33: #{tpu_custom_call.1} parent=31 // pred_check
          %p336 = pneg %p115
        $region34: #{tpu_custom_call.1} parent=31 // pred_check_branch
          %338 = sbr.rel (%p336) target = $region36
        $region35: #{tpu_custom_call.1} parent=31 // pred_region
          _
        $region36: #{tpu_custom_call.1} parent=31 // pred_fallthru
          _
        // Predicated region
        $region37: #{tpu_custom_call.1} parent=31 // pred_check
          %p339 = pneg %p141
        $region38: #{tpu_custom_call.1} parent=31 // pred_check_branch
          %341 = sbr.rel (%p339) target = $region40
        $region39: #{tpu_custom_call.1} parent=31 // pred_region
          %s343 = ssub.s32 128, 128
          %344 = vsyncadd %s332, %s343
          %s345 = smul.addr %s19, 128
          %s346 = scalar_lea.hbm %s4, %s345
          %s348 = sshll.u32 %s335, 4
          %s349 = int_to_ptr.vmem [resolvable:$true] %s348
          %351 = dma.vmem_to_hbm [thread:$0]  %s349, 128, %s346, %s332
        $region40: #{tpu_custom_call.1} parent=31 // pred_fallthru
          _
      $region32: #{tpu_custom_call.1} parent=5 // pred_fallthru
        _
      %p352 = scmp.le.s32.totalorder 2, %s14
      // Predicated region
      $region41: #{tpu_custom_call.1} parent=5 // pred_check
        %p353 = pneg %p352
      $region42: #{tpu_custom_call.1} parent=5 // pred_check_branch
        %355 = sbr.rel (%p353) target = $region44
      $region43: #{tpu_custom_call.1} parent=5 // pred_region
        %s356 = ssub.s32 %s14, 2
        // Predicated region
        $region45: #{tpu_custom_call.1} parent=43 // pred_check
          %p357 = pneg %p121
        $region46: #{tpu_custom_call.1} parent=43 // pred_check_branch
          %359 = sbr.rel (%p357) target = $region48
        $region47: #{tpu_custom_call.1} parent=43 // pred_region
          %p360 = scmp.lt.s32.totalorder %s20, 1
          %s361 = scalar_select %p360, %s20, 1
          %s362 = smul.addr %s361, 8
          %s363 = scalar_lea.vmem %s3, %s362
        $region48: #{tpu_custom_call.1} parent=43 // pred_fallthru
          _
        // Predicated region
        $region49: #{tpu_custom_call.1} parent=43 // pred_check
          %p364 = pneg %p147
        $region50: #{tpu_custom_call.1} parent=43 // pred_check_branch
          %366 = sbr.rel (%p364) target = $region52
        $region51: #{tpu_custom_call.1} parent=43 // pred_region
          %s367 = sand.u32 %s132, 1
          %s368 = scalar_lea.sflag [#allocation3], %s367
          %s369 = sand.u32 %s132, 1
          %s370 = smul.addr %s369, 8
          %s371 = scalar_lea.vmem [#allocation2], %s370
          %372 = dma.done %s368, 128
        $region52: #{tpu_custom_call.1} parent=43 // pred_fallthru
          _
      $region44: #{tpu_custom_call.1} parent=5 // pred_fallthru
        _
    $region6: #{tpu_custom_call.1} parent=1 // loop_footer
      %s18 = sadd.s32 1, %s14
    $region7: #{tpu_custom_call.1} parent=1 // loop_footer_branch
      %13 = sbr.rel target = $region3
    $region8: #{tpu_custom_call.1} parent=1 // loop_exit
      _
    %373 = vsyncpa [#allocation3], 1
    %s374 = scalar_lea.sflag [#allocation3], 1
    %375 = vsyncpa %s374, 1

</llo_original>
